<compile_context>
chip_gen: v5e
topology: v5e:2x2
jax: 0.10.0
libtpu: 0.0.40
codegen_flags: <defaults>
</compile_context>

<pallas_src>
import functools

import jax
import jax.numpy as jnp
from jax import lax
from jax.experimental import pallas as pl
from jax.experimental.pallas import tpu as pltpu


VMEM_LIMIT = 56 * 1024 * 1024          # < 64 MiB physical on v7x; safe on v5e/v6e
TILE_VMEM_BUDGET = 36 * 1024 * 1024    # budget used when picking the L tile


# ----------------------------- shared helpers -----------------------------

def _elu_plus_one(x):
    # elu(x) + 1 == x + 1 for x > 0, exp(x) otherwise
    return jnp.where(x > 0, x + 1.0, jnp.exp(x))


def _layer_norm(x, w, b, eps=1e-5):
    mu = jnp.mean(x, axis=-1, keepdims=True)
    xc = x - mu
    var = jnp.mean(xc * xc, axis=-1, keepdims=True)
    return xc * lax.rsqrt(var + eps) * w + b


# ------------- kernel A: per-batch linear-attention summaries (S-tiled) -------------

def kv_summary_kernel(s_ref, wk_ref, wv_ref, mask_ref, kvm_ref,
                      kv_acc_ref, ks_acc_ref, *, inv_s):
    si = pl.program_id(1)

    @pl.when(si == 0)
    def _init():
        kv_acc_ref[...] = jnp.zeros_like(kv_acc_ref)
        ks_acc_ref[...] = jnp.zeros_like(ks_acc_ref)

    sb = s_ref[0].astype(jnp.bfloat16)                                   # [TS, C]
    k = jnp.dot(sb, wk_ref[...], preferred_element_type=jnp.float32)     # [TS, C]
    v = jnp.dot(sb, wv_ref[...], preferred_element_type=jnp.float32)     # [TS, C]
    K = _elu_plus_one(k)                                                 # f32

    # KV[c1,c2] += sum_s K[s,c1] * V[s,c2]   (contract source axis)
    dn = (((0,), (0,)), ((), ()))
    kv_acc_ref[...] += lax.dot_general(K.astype(jnp.bfloat16), v.astype(jnp.bfloat16),
                                       dn, preferred_element_type=jnp.float32)
    # Ksum[c] += sum_s K[s,c]  -- sublane reduction, no MXU / no ones array.
    ks_acc_ref[...] += jnp.sum(K, axis=0, keepdims=True)                 # [1, C]

    @pl.when(si == pl.num_programs(1) - 1)
    def _finalize():
        mask = mask_ref[...]                                             # [C, C] block-diag
        kv = kv_acc_ref[...] * mask * inv_s                              # [C, C]
        # M[c1,c2] = Ksum[c1] * mask[c1,c2]; mask is symmetric so this is
        # (mask * ksum_row).T — one square transpose, once per batch.
        m = (mask * ks_acc_ref[...]).T * inv_s                           # [C, C]
        kvm_ref[0] = jnp.concatenate([kv, m], axis=-1).astype(kvm_ref.dtype)


# ------------------- kernel B: main encoder-layer block kernel -------------------

def encoder_block_kernel(x_ref, kvm_ref,
                         wq_ref, wm_ref, w1x_ref, w1m_ref, w2_ref,
                         ln1w_ref, ln1b_ref, ln2w_ref, ln2b_ref,
                         o_ref, *, eps):
    xb = x_ref[0]                                                        # [TL, C] f32
    c = xb.shape[-1]
    xb_bf = xb.astype(jnp.bfloat16)

    # Q projection + feature map (elu + 1)
    q = jnp.dot(xb_bf, wq_ref[...], preferred_element_type=jnp.float32)
    Q = _elu_plus_one(q).astype(jnp.bfloat16)                            # [TL, C]

    # Fused numerator/denominator: one [TL,C] @ [C,2C] MXU matmul against the
    # precomputed bf16 summary [KV*mask | Ksum*mask] (both pre-scaled by 1/S).
    nd = jnp.dot(Q, kvm_ref[0], preferred_element_type=jnp.float32)      # [TL, 2C]
    num = nd[:, :c]
    den = nd[:, c:]
    message = num * pl.reciprocal(den + eps, approx=True)                # EUP

    # merge + norm1
    message = jnp.dot(message.astype(jnp.bfloat16), wm_ref[...],
                      preferred_element_type=jnp.float32)
    message = _layer_norm(message, ln1w_ref[0], ln1b_ref[0])

    # MLP on concat([x, message]) without materializing the concat.
    h1 = (jnp.dot(xb_bf, w1x_ref[...], preferred_element_type=jnp.float32) +
          jnp.dot(message.astype(jnp.bfloat16), w1m_ref[...],
                  preferred_element_type=jnp.float32))
    h1 = jnp.maximum(h1, 0.0)
    m2 = jnp.dot(h1.astype(jnp.bfloat16), w2_ref[...],
                 preferred_element_type=jnp.float32)
    m2 = _layer_norm(m2, ln2w_ref[0], ln2b_ref[0])

    o_ref[0] = (xb + m2).astype(o_ref.dtype)


# --------------------------------- wrapper ----------------------------------

def _pick_s_tile(S):
    if S <= 512:
        return S                       # single full block
    for t in (2048, 1024, 512):
        if S % t == 0:
            return t
    return S                           # fallback (see TODO at top of file)


def _pick_l_tile(L, C):
    if L <= 128:
        return L                       # single full block (small / toy shapes)
    lp128 = -(-L // 128) * 128
    # rough resident-VMEM estimate: double-buffered bf16 weights+summary (~40*C^2 B)
    # plus f32 x/out tiles and f32 intermediates (~48*t*C B).
    fits = [t for t in (1024, 512, 256, 128)
            if 40 * C * C + 48 * t * C <= TILE_VMEM_BUDGET and t <= lp128]
    if not fits:
        return 128
    for t in fits:
        if L % t == 0:
            return t
    return fits[0]                     # tail tile handled by padding in the wrapper


def encoder_layer(x, source, params, nhead):
    N, L, C = x.shape
    S = source.shape[1]
    D = C // nhead
    wq, wk, wv, wm, w1, w2, ln1w, ln1b, ln2w, ln2b = params

    # NOTE: for production, C should be a multiple of 128 (ideally 256 on
    # v6e/v7x) for lane-dense stores and full MXU width.
    bf = jnp.bfloat16
    wq_b = wq.astype(bf)
    wk_b = wk.astype(bf)
    wv_b = wv.astype(bf)
    wm_b = wm.astype(bf)
    w1x_b = w1[:C, :].astype(bf)       # rows of w1 multiplying x
    w1m_b = w1[C:, :].astype(bf)       # rows of w1 multiplying message
    w2_b = w2.astype(bf)

    # Block-diagonal head mask: mask[c1,c2] = 1 iff c1, c2 belong to the same head.
    head_id = jnp.arange(C, dtype=jnp.int32) // D
    mask = (head_id[:, None] == head_id[None, :]).astype(jnp.float32)

    cparams = lambda sem: pltpu.CompilerParams(
        dimension_semantics=sem, vmem_limit_bytes=VMEM_LIMIT)

    # --- Kernel A: per-batch fused bf16 summary [KV*mask | Ksum*mask] / S ---
    ts = _pick_s_tile(S)
    kvm = pl.pallas_call(
        functools.partial(kv_summary_kernel, inv_s=1.0 / S),
        out_shape=jax.ShapeDtypeStruct((N, C, 2 * C), jnp.bfloat16),
        grid=(N, S // ts),
        in_specs=[
            pl.BlockSpec((1, ts, C), lambda n, s: (n, s, 0)),   # source tile
            pl.BlockSpec((C, C), lambda n, s: (0, 0)),          # wk^T
            pl.BlockSpec((C, C), lambda n, s: (0, 0)),          # wv^T
            pl.BlockSpec((C, C), lambda n, s: (0, 0)),          # head mask
        ],
        out_specs=pl.BlockSpec((1, C, 2 * C), lambda n, s: (n, 0, 0)),
        scratch_shapes=[pltpu.VMEM((C, C), jnp.float32),        # KV accumulator
                        pltpu.VMEM((1, C), jnp.float32)],       # Ksum accumulator
        compiler_params=cparams(("parallel", "arbitrary")),
    )(source, wk_b, wv_b, mask)

    # --- Kernel B: main block, tiled over (batch, L) — both axes parallel ---
    tl = _pick_l_tile(L, C)
    Lp = -(-L // tl) * tl
    x_in = x if Lp == L else jnp.pad(x, ((0, 0), (0, Lp - L), (0, 0)))

    wfull = lambda n, l: (0, 0)
    out = pl.pallas_call(
        functools.partial(encoder_block_kernel, eps=float(1e-6 / S)),
        out_shape=jax.ShapeDtypeStruct((N, Lp, C), jnp.float32),
        grid=(N, Lp // tl),
        in_specs=[
            pl.BlockSpec((1, tl, C), lambda n, l: (n, l, 0)),   # x tile
            pl.BlockSpec((1, C, 2 * C), lambda n, l: (n, 0, 0)),  # fused summary (resident over l)
            pl.BlockSpec((C, C), wfull),                        # wq^T
            pl.BlockSpec((C, C), wfull),                        # merge^T
            pl.BlockSpec((C, 2 * C), wfull),                    # w1^T (x half)
            pl.BlockSpec((C, 2 * C), wfull),                    # w1^T (message half)
            pl.BlockSpec((2 * C, C), wfull),                    # w2^T
            pl.BlockSpec((1, C), wfull),                        # ln1 weight
            pl.BlockSpec((1, C), wfull),                        # ln1 bias
            pl.BlockSpec((1, C), wfull),                        # ln2 weight
            pl.BlockSpec((1, C), wfull),                        # ln2 bias
        ],
        out_specs=pl.BlockSpec((1, tl, C), lambda n, l: (n, l, 0)),
        compiler_params=cparams(("parallel", "parallel")),
    )(x_in, kvm, wq_b, wm_b, w1x_b, w1m_b, w2_b, ln1w, ln1b, ln2w, ln2b)

    if Lp != L:
        out = out[:, :L, :]
    return out


# ------------------------- pure-JAX (f32) reference --------------------------

def encoder_layer_ref(x, source, params, nhead):
    wq, wk, wv, wm, w1, w2, ln1w, ln1b, ln2w, ln2b = params
    N, L, C = x.shape
    S = source.shape[1]
    D = C // nhead

    q = (x @ wq).reshape(N, L, nhead, D)
    k = (source @ wk).reshape(N, S, nhead, D)
    v = (source @ wv).reshape(N, S, nhead, D)

    Q = jnp.where(q > 0, q + 1.0, jnp.exp(q))
    K = jnp.where(k > 0, k + 1.0, jnp.exp(k))
    v = v / S
    KV = jnp.einsum('nshd,nshv->nhdv', K, v)
    Z = 1.0 / (jnp.einsum('nlhd,nhd->nlh', Q, K.sum(axis=1)) + 1e-6)
    msg = jnp.einsum('nlhd,nhdv,nlh->nlhv', Q, KV, Z) * S

    msg = msg.reshape(N, L, C) @ wm
    msg = _layer_norm(msg, ln1w[0], ln1b[0])
    cat = jnp.concatenate([x, msg], axis=-1)
    msg = jnp.maximum(cat @ w1, 0.0) @ w2
    msg = _layer_norm(msg, ln2w[0], ln2b[0])
    return x + msg


# --------------------------------- main ------------------------------------

if __name__ == "__main__":
    # Toy shapes; note C=32 < 128 lanes here — production should use C as a
    # multiple of 128 (256 on v6e/v7x) for lane-dense stores / full MXU width.
    N, L, S, d_model, nhead = 2, 8, 8, 32, 4

    key = jax.random.PRNGKey(0)
    ks = jax.random.split(key, 8)

    x = jax.random.normal(ks[0], (N, L, d_model), dtype=jnp.float32)
    source = jax.random.normal(ks[1], (N, S, d_model), dtype=jnp.float32)

    scale = 0.05
    # weights stored as [in, out] (i.e. PyTorch Linear weight transposed)
    wq = scale * jax.random.normal(ks[2], (d_model, d_model), dtype=jnp.float32)
    wk = scale * jax.random.normal(ks[3], (d_model, d_model), dtype=jnp.float32)
    wv = scale * jax.random.normal(ks[4], (d_model, d_model), dtype=jnp.float32)
    wm = scale * jax.random.normal(ks[5], (d_model, d_model), dtype=jnp.float32)
    w1 = scale * jax.random.normal(ks[6], (2 * d_model, 2 * d_model), dtype=jnp.float32)
    w2 = scale * jax.random.normal(ks[7], (2 * d_model, d_model), dtype=jnp.float32)
    ln1w = jnp.ones((1, d_model), dtype=jnp.float32)
    ln1b = jnp.zeros((1, d_model), dtype=jnp.float32)
    ln2w = jnp.ones((1, d_model), dtype=jnp.float32)
    ln2b = jnp.zeros((1, d_model), dtype=jnp.float32)

    params = (wq, wk, wv, wm, w1, w2, ln1w, ln1b, ln2w, ln2b)

    out = encoder_layer(x, source, params, nhead)
    out = jax.block_until_ready(out)

    ref = encoder_layer_ref(x, source, params, nhead)
    assert out.shape == (N, L, d_model)
    # bf16 matmul operands / bf16 summaries (f32 accumulation) + approx EUP
    # reciprocal -> loose tolerance.
    assert jnp.allclose(out, ref, rtol=5e-2, atol=5e-2), "Pallas output mismatch vs reference"

    print("KERNEL_OK")
</pallas_src>

<mosaic_0001>
module attributes {stable_mosaic.version = 11 : i64} {
  func.func @kv_summary_kernel(%arg0: i32, %arg1: i32, %arg2: memref<1x8x32xf32, #tpu.memory_space<vmem>>, %arg3: memref<32x32xbf16, #tpu.memory_space<vmem>>, %arg4: memref<32x32xbf16, #tpu.memory_space<vmem>>, %arg5: memref<32x32xf32, #tpu.memory_space<vmem>>, %arg6: memref<1x32x64xbf16, #tpu.memory_space<vmem>>, %arg7: memref<32x32xf32, #tpu.memory_space<vmem>>, %arg8: memref<1x32xf32, #tpu.memory_space<vmem>>) attributes {dimension_semantics = [#tpu.dimension_semantics<parallel>, #tpu.dimension_semantics<arbitrary>], iteration_bounds = array<i64: 2, 1>, scalar_prefetch = 0 : i64, scratch_operands = 2 : i64, tpu.core_type = #tpu.core_type<tc>, window_params = [{transform_indices = @transform_0, window_bounds = array<i64: 1, 8, 32>}, {pipeline_mode = #tpu.pipeline_mode<synchronous>, transform_indices = @transform_1, window_bounds = array<i64: 32, 32>}, {pipeline_mode = #tpu.pipeline_mode<synchronous>, transform_indices = @transform_2, window_bounds = array<i64: 32, 32>}, {pipeline_mode = #tpu.pipeline_mode<synchronous>, transform_indices = @transform_3, window_bounds = array<i64: 32, 32>}, {transform_indices = @transform_4, window_bounds = array<i64: 1, 32, 64>}]} {
    %c0_i32 = arith.constant 0 : i32
    %0 = arith.cmpi eq, %arg1, %c0_i32 : i32
    %1 = arith.extui %0 : i1 to i32
    %c0_i32_0 = arith.constant 0 : i32
    %2 = arith.cmpi ne, %1, %c0_i32_0 : i32
    scf.if %2 {
      %cst_22 = arith.constant 0.000000e+00 : f32
      %30 = vector.broadcast %cst_22 : f32 to vector<32x32xf32>
      %c0_23 = arith.constant 0 : index
      %c0_24 = arith.constant 0 : index
      %31 = vector.load %arg7[%c0_23, %c0_24] : memref<32x32xf32, #tpu.memory_space<vmem>>, vector<32x32xf32>
      tpu.vector_store %arg7[%c0_23, %c0_24], %30 {strides = array<i32>} : memref<32x32xf32, #tpu.memory_space<vmem>>, vector<32x32xf32>,
      %cst_25 = arith.constant 0.000000e+00 : f32
      %32 = vector.broadcast %cst_25 : f32 to vector<1x32xf32>
      %c0_26 = arith.constant 0 : index
      %c0_27 = arith.constant 0 : index
      %33 = vector.load %arg8[%c0_26, %c0_27] : memref<1x32xf32, #tpu.memory_space<vmem>>, vector<1x32xf32>
      tpu.vector_store %arg8[%c0_26, %c0_27], %32 {strides = array<i32>} : memref<1x32xf32, #tpu.memory_space<vmem>>, vector<1x32xf32>,
    } else {
    }
    %c0 = arith.constant 0 : index
    %c0_1 = arith.constant 0 : index
    %c0_2 = arith.constant 0 : index
    %3 = vector.load %arg2[%c0, %c0_1, %c0_2] : memref<1x8x32xf32, #tpu.memory_space<vmem>>, vector<1x8x32xf32>
    %4 = vector.shape_cast %3 : vector<1x8x32xf32> to vector<8x32xf32>
    %5 = arith.truncf %4 : vector<8x32xf32> to vector<8x32xbf16>
    %c0_3 = arith.constant 0 : index
    %c0_4 = arith.constant 0 : index
    %6 = vector.load %arg3[%c0_3, %c0_4] : memref<32x32xbf16, #tpu.memory_space<vmem>>, vector<32x32xbf16>
    %cst = arith.constant dense<0.000000e+00> : vector<8x32xf32>
    %7 = tpu.matmul %5, %6, %cst {dimension_numbers = #tpu.dot_dimension_numbers<[1], [0], [0], [1], [0, 0, 1, 1], [], []>} : vector<8x32xbf16>, vector<32x32xbf16>, vector<8x32xf32> -> vector<8x32xf32>
    %c0_5 = arith.constant 0 : index
    %c0_6 = arith.constant 0 : index
    %8 = vector.load %arg4[%c0_5, %c0_6] : memref<32x32xbf16, #tpu.memory_space<vmem>>, vector<32x32xbf16>
    %cst_7 = arith.constant dense<0.000000e+00> : vector<8x32xf32>
    %9 = tpu.matmul %5, %8, %cst_7 {dimension_numbers = #tpu.dot_dimension_numbers<[1], [0], [0], [1], [0, 0, 1, 1], [], []>} : vector<8x32xbf16>, vector<32x32xbf16>, vector<8x32xf32> -> vector<8x32xf32>
    %cst_8 = arith.constant 0.000000e+00 : f32
    %10 = vector.broadcast %cst_8 : f32 to vector<8x32xf32>
    %11 = arith.cmpf ogt, %7, %10 : vector<8x32xf32>
    %cst_9 = arith.constant 1.000000e+00 : f32
    %12 = vector.broadcast %cst_9 : f32 to vector<8x32xf32>
    %13 = arith.addf %7, %12 : vector<8x32xf32>
    %14 = math.exp %7 : vector<8x32xf32>
    %15 = arith.select %11, %13, %14 : vector<8x32xi1>, vector<8x32xf32>
    %c0_10 = arith.constant 0 : index
    %c0_11 = arith.constant 0 : index
    %16 = vector.load %arg7[%c0_10, %c0_11] : memref<32x32xf32, #tpu.memory_space<vmem>>, vector<32x32xf32>
    %17 = arith.truncf %15 : vector<8x32xf32> to vector<8x32xbf16>
    %18 = arith.truncf %9 : vector<8x32xf32> to vector<8x32xbf16>
    %cst_12 = arith.constant dense<0.000000e+00> : vector<32x32xf32>
    %19 = tpu.matmul %17, %18, %cst_12 {dimension_numbers = #tpu.dot_dimension_numbers<[0], [0], [1], [1], [0, 1, 1, 1], [], []>} : vector<8x32xbf16>, vector<8x32xbf16>, vector<32x32xf32> -> vector<32x32xf32>
    %20 = arith.addf %16, %19 : vector<32x32xf32>
    %c0_13 = arith.constant 0 : index
    %c0_14 = arith.constant 0 : index
    %21 = vector.load %arg7[%c0_13, %c0_14] : memref<32x32xf32, #tpu.memory_space<vmem>>, vector<32x32xf32>
    tpu.vector_store %arg7[%c0_13, %c0_14], %20 {strides = array<i32>} : memref<32x32xf32, #tpu.memory_space<vmem>>, vector<32x32xf32>,
    %c0_15 = arith.constant 0 : index
    %c0_16 = arith.constant 0 : index
    %22 = vector.load %arg8[%c0_15, %c0_16] : memref<1x32xf32, #tpu.memory_space<vmem>>, vector<1x32xf32>
    %cst_17 = arith.constant dense<0.000000e+00> : vector<32xf32>
    %23 = vector.multi_reduction <add>, %15, %cst_17 [0] : vector<8x32xf32> to vector<32xf32>
    %24 = vector.shape_cast %23 : vector<32xf32> to vector<1x32xf32>
    %25 = arith.addf %22, %24 : vector<1x32xf32>
    %c0_18 = arith.constant 0 : index
    %c0_19 = arith.constant 0 : index
    %26 = vector.load %arg8[%c0_18, %c0_19] : memref<1x32xf32, #tpu.memory_space<vmem>>, vector<1x32xf32>
    tpu.vector_store %arg8[%c0_18, %c0_19], %25 {strides = array<i32>} : memref<1x32xf32, #tpu.memory_space<vmem>>, vector<1x32xf32>,
    %c0_i32_20 = arith.constant 0 : i32
    %27 = arith.cmpi eq, %arg1, %c0_i32_20 : i32
    %28 = arith.extui %27 : i1 to i32
    %c0_i32_21 = arith.constant 0 : i32
    %29 = arith.cmpi ne, %28, %c0_i32_21 : i32
    scf.if %29 {
      %c0_22 = arith.constant 0 : index
      %c0_23 = arith.constant 0 : index
      %30 = vector.load %arg5[%c0_22, %c0_23] : memref<32x32xf32, #tpu.memory_space<vmem>>, vector<32x32xf32>
      %c0_24 = arith.constant 0 : index
      %c0_25 = arith.constant 0 : index
      %31 = vector.load %arg7[%c0_24, %c0_25] : memref<32x32xf32, #tpu.memory_space<vmem>>, vector<32x32xf32>
      %32 = arith.mulf %31, %30 : vector<32x32xf32>
      %cst_26 = arith.constant 1.250000e-01 : f32
      %33 = vector.broadcast %cst_26 : f32 to vector<32x32xf32>
      %34 = arith.mulf %32, %33 : vector<32x32xf32>
      %c0_27 = arith.constant 0 : index
      %c0_28 = arith.constant 0 : index
      %35 = vector.load %arg8[%c0_27, %c0_28] : memref<1x32xf32, #tpu.memory_space<vmem>>, vector<1x32xf32>
      %36 = vector.broadcast %35 : vector<1x32xf32> to vector<32x32xf32>
      %37 = arith.mulf %30, %36 : vector<32x32xf32>
      %38 = tpu.transpose %37, [1, 0] : vector<32x32xf32> -> vector<32x32xf32>
      %cst_29 = arith.constant 1.250000e-01 : f32
      %39 = vector.broadcast %cst_29 : f32 to vector<32x32xf32>
      %40 = arith.mulf %38, %39 : vector<32x32xf32>
      %41 = tpu.concatenate %34, %40 in 1 : vector<32x32xf32>, vector<32x32xf32> -> vector<32x64xf32>
      %42 = arith.truncf %41 : vector<32x64xf32> to vector<32x64xbf16>
      %c0_30 = arith.constant 0 : index
      %c0_31 = arith.constant 0 : index
      %c0_32 = arith.constant 0 : index
      %43 = vector.load %arg6[%c0_30, %c0_31, %c0_32] : memref<1x32x64xbf16, #tpu.memory_space<vmem>>, vector<1x32x64xbf16>
      %44 = vector.shape_cast %43 : vector<1x32x64xbf16> to vector<32x64xbf16>
      %45 = vector.shape_cast %42 : vector<32x64xbf16> to vector<1x32x64xbf16>
      tpu.vector_store %arg6[%c0_30, %c0_31, %c0_32], %45 {strides = array<i32>} : memref<1x32x64xbf16, #tpu.memory_space<vmem>>, vector<1x32x64xbf16>,
    } else {
    }
    return
  }
  func.func @transform_0(%arg0: i32, %arg1: i32) -> (i32, i32, i32) {
    %c0_i32 = arith.constant 0 : i32
    %c0_i32_0 = arith.constant 0 : i32
    return %arg0, %arg1, %c0_i32 : i32, i32, i32
  }
  func.func @transform_1(%arg0: i32, %arg1: i32) -> (i32, i32) {
    %c0_i32 = arith.constant 0 : i32
    %c0_i32_0 = arith.constant 0 : i32
    %c0_i32_1 = arith.constant 0 : i32
    return %c0_i32, %c0_i32_0 : i32, i32
  }
  func.func @transform_2(%arg0: i32, %arg1: i32) -> (i32, i32) {
    %c0_i32 = arith.constant 0 : i32
    %c0_i32_0 = arith.constant 0 : i32
    %c0_i32_1 = arith.constant 0 : i32
    return %c0_i32, %c0_i32_0 : i32, i32
  }
  func.func @transform_3(%arg0: i32, %arg1: i32) -> (i32, i32) {
    %c0_i32 = arith.constant 0 : i32
    %c0_i32_0 = arith.constant 0 : i32
    %c0_i32_1 = arith.constant 0 : i32
    return %c0_i32, %c0_i32_0 : i32, i32
  }
  func.func @transform_4(%arg0: i32, %arg1: i32) -> (i32, i32, i32) {
    %c0_i32 = arith.constant 0 : i32
    %c0_i32_0 = arith.constant 0 : i32
    %c0_i32_1 = arith.constant 0 : i32
    return %arg0, %c0_i32, %c0_i32_0 : i32, i32, i32
  }
}

</mosaic_0001>

<llo_original>
// kernel: tpu_custom_call.1
$region0: #{tpu_custom_call.1}
  #allocation0 [shape = 'u32[]', space=smem, size = 0x4, offset = 0x4, fixed_abs, tag = 'smem constant byte address 0x4 - core index']
  #allocation1 [shape = 'u32[72,128]{1,0:T(1,128)}', space=vmem, size = 0x9000, scoped, tag = 'internal scratch']
  #allocation2 [shape = 'f32[32,32]{1,0:T(8,128)}', space=vmem, size = 0x4000, scoped, tag = 'scratch operand']
  #allocation3 [shape = 'f32[1,32]{1,0:T(1,128)}', space=vmem, size = 0x200, scoped, tag = 'scratch operand']
  %s0 = inlined_call_operand.hbm [shape: f32[2,8,32], index: 0, kind: input, shape index: {}]
  %s1 = inlined_call_operand.hbm [shape: bf16[32,32], index: 1, kind: input, shape index: {}]
  %s2 = inlined_call_operand.hbm [shape: bf16[32,32], index: 2, kind: input, shape index: {}]
  %s3 = inlined_call_operand.hbm [shape: f32[32,32], index: 3, kind: input, shape index: {}]
  %s4 = inlined_call_operand.hbm [shape: bf16[2,32,64], index: 4, kind: output, shape index: {}]
  %s5 = sld [smem:[#allocation0]]
  $region73: #{tpu_custom_call.1} parent=0
    _
  %s7 = ssub.s32 1, %s5
  %s8 = scalar_select 0, %s7, %s5
  $region1: #{tpu_custom_call.1} parent=0
    #allocation4 [shape = 'u8[8192]{0}', space=vmem, size = 0x2000, scoped, tag = 'input window, operand 0']
    #allocation5 [shape = 's32[2]{0}', space=sflag, size = 0x8, scoped, tag = 'scoped memory for tpu_custom_call.1']
    #allocation6 [shape = 's32[2]{0}', space=sflag, size = 0x8, scoped, tag = 'scoped memory for tpu_custom_call.1']
    #allocation7 [shape = 'u8[8192]{0}', space=vmem, size = 0x2000, scoped, tag = 'input window, operand 1, single buffered']
    #allocation8 [shape = 's32[1]{0}', space=sflag, size = 0x4, scoped, tag = 'scoped memory for tpu_custom_call.1']
    #allocation9 [shape = 'u8[8192]{0}', space=vmem, size = 0x2000, scoped, tag = 'input window, operand 2, single buffered']
    #allocation10 [shape = 'u8[16384]{0}', space=vmem, size = 0x4000, scoped, tag = 'input window, operand 3, single buffered']
    #allocation11 [shape = 's32[1]{0}', space=sflag, size = 0x4, scoped, tag = 'scoped memory for tpu_custom_call.1']
    #allocation12 [shape = 'u8[16384]{0}', space=vmem, size = 0x4000, scoped, tag = 'output window, operand 0']
    %9 = vsyncpa [#allocation5], 0
    %s10 = scalar_lea.sflag [#allocation5], 1
    %11 = vsyncpa %s10, 0
    %12 = vsyncpa [#allocation8], 0
    %13 = vsyncpa [#allocation11], 0
    %14 = vsyncpa [#allocation6], 0
    %s15 = scalar_lea.sflag [#allocation6], 1
    %16 = vsyncpa %s15, 0
    loop: start=0, step=1, limit=4
    $region2: #{tpu_custom_call.1} parent=1 // loop_pre_header
      _
    $region3: #{tpu_custom_call.1} parent=1 // loop_header
      %s18 = sphi 0, %s22
      %p19 = scmp.ge.s32.totalorder %s18, 4
      %s25 = sphi 0, %s37
      %s26 = sphi 0, %s33
      %s27 = sphi 0, %s25
      %s28 = sphi 0, %s26
      %s29 = sphi 0, %s27
      %s30 = sphi 0, %s28
      %s42 = sphi 0, %s44
      %s45 = sphi 0, %s42
      %s46 = sphi 0, %s45
      %s62 = sphi 0, %s46
      %s66 = sphi 0, %s66
      %s68 = sphi 0, %s66
      %s69 = sphi 0, %s68
      %s83 = sphi 0, %s69
      %s87 = sphi 0, %s87
      %s89 = sphi 0, %s87
      %s90 = sphi 0, %s89
      %s104 = sphi 0, %s90
      %s108 = sphi 0, %s108
      %s110 = sphi 0, %s108
      %s111 = sphi 0, %s110
      %s125 = sphi 0, %s111
      %s131 = sphi 0, %s133
      %s134 = sphi 0, %s131
      %s135 = sphi 0, %s134
      %s151 = sphi 0, %s135
    $region4: #{tpu_custom_call.1} parent=1 // loop_header_branch
      %21 = sbr.rel (%p19) target = $region8
    $region5: #{tpu_custom_call.1} parent=1 // loop_body
      %s23 = ssub.s32 %s18, 1
      %s24 = ssub.s32 %s18, 2
      %s31 = sadd.s32 1, %s26
      %p32 = scmp.ge.s32.totalorder %s31, 1
      %s33 = scalar_select %p32, 0, %s31
      %s34 = sadd.s32 1, %s25
      %s35 = scalar_select %p32, %s34, %s25
      %p36 = scmp.ge.s32.totalorder %s35, 2
      %s37 = scalar_select %p36, 0, %s35
      %s38 = ssub.s32 %s25, %s37
      %s39 = ssub.s32 %s26, %s33
      %s40 = sor.u32 %s38, %s39
      %p41 = scmp.eq.s32.totalorder %s40, 0
      %s43 = sadd.s32 %s42, 1
      %s44 = scalar_select %p41, %s42, %s43
      %p47 = pneg %p41
      %p48 = scmp.eq.s32.totalorder %s18, 1
      %p49 = por %p47, %p48
      %p50 = scmp.ne.s32.totalorder %s42, %s45
      %p51 = scmp.eq.s32.totalorder %s18, 0
      %p52 = por %p50, %p51
      %p53 = scmp.ne.s32.totalorder %s42, %s45
      %p54 = scmp.eq.s32.totalorder %s23, 1
      %p55 = por %p53, %p54
      %p56 = scmp.ne.s32.totalorder %s45, %s46
      %p57 = scmp.eq.s32.totalorder %s23, 0
      %p58 = por %p56, %p57
      %p59 = scmp.ne.s32.totalorder %s45, %s46
      %p60 = scmp.eq.s32.totalorder %s24, 1
      %p61 = por %p59, %p60
      %p63 = scmp.ne.s32.totalorder %s46, %s62
      %p64 = scmp.eq.s32.totalorder %s24, 0
      %p65 = por %p63, %p64
      %s67 = sadd.s32 %s66, 1
      %p70 = scmp.eq.s32.totalorder %s18, 1
      %p71 = scmp.ne.s32.totalorder %s66, %s68
      %p72 = scmp.eq.s32.totalorder %s18, 0
      %p73 = por %p71, %p72
      %p74 = scmp.ne.s32.totalorder %s66, %s68
      %p75 = scmp.eq.s32.totalorder %s23, 1
      %p76 = por %p74, %p75
      %p77 = scmp.ne.s32.totalorder %s68, %s69
      %p78 = scmp.eq.s32.totalorder %s23, 0
      %p79 = por %p77, %p78
      %p80 = scmp.ne.s32.totalorder %s68, %s69
      %p81 = scmp.eq.s32.totalorder %s24, 1
      %p82 = por %p80, %p81
      %p84 = scmp.ne.s32.totalorder %s69, %s83
      %p85 = scmp.eq.s32.totalorder %s24, 0
      %p86 = por %p84, %p85
      %s88 = sadd.s32 %s87, 1
      %p91 = scmp.eq.s32.totalorder %s18, 1
      %p92 = scmp.ne.s32.totalorder %s87, %s89
      %p93 = scmp.eq.s32.totalorder %s18, 0
      %p94 = por %p92, %p93
      %p95 = scmp.ne.s32.totalorder %s87, %s89
      %p96 = scmp.eq.s32.totalorder %s23, 1
      %p97 = por %p95, %p96
      %p98 = scmp.ne.s32.totalorder %s89, %s90
      %p99 = scmp.eq.s32.totalorder %s23, 0
      %p100 = por %p98, %p99
      %p101 = scmp.ne.s32.totalorder %s89, %s90
      %p102 = scmp.eq.s32.totalorder %s24, 1
      %p103 = por %p101, %p102
      %p105 = scmp.ne.s32.totalorder %s90, %s104
      %p106 = scmp.eq.s32.totalorder %s24, 0
      %p107 = por %p105, %p106
      %s109 = sadd.s32 %s108, 1
      %p112 = scmp.eq.s32.totalorder %s18, 1
      %p113 = scmp.ne.s32.totalorder %s108, %s110
      %p114 = scmp.eq.s32.totalorder %s18, 0
      %p115 = por %p113, %p114
      %p116 = scmp.ne.s32.totalorder %s108, %s110
      %p117 = scmp.eq.s32.totalorder %s23, 1
      %p118 = por %p116, %p117
      %p119 = scmp.ne.s32.totalorder %s110, %s111
      %p120 = scmp.eq.s32.totalorder %s23, 0
      %p121 = por %p119, %p120
      %p122 = scmp.ne.s32.totalorder %s110, %s111
      %p123 = scmp.eq.s32.totalorder %s24, 1
      %p124 = por %p122, %p123
      %p126 = scmp.ne.s32.totalorder %s111, %s125
      %p127 = scmp.eq.s32.totalorder %s24, 0
      %p128 = por %p126, %p127
      %s129 = ssub.s32 %s25, %s37
      %p130 = scmp.eq.s32.totalorder %s129, 0
      %s132 = sadd.s32 %s131, 1
      %s133 = scalar_select %p130, %s131, %s132
      %p136 = pneg %p130
      %p137 = scmp.eq.s32.totalorder %s18, 1
      %p138 = por %p136, %p137
      %p139 = scmp.ne.s32.totalorder %s131, %s134
      %p140 = scmp.eq.s32.totalorder %s18, 0
      %p141 = por %p139, %p140
      %p142 = scmp.ne.s32.totalorder %s131, %s134
      %p143 = scmp.eq.s32.totalorder %s23, 1
      %p144 = por %p142, %p143
      %p145 = scmp.ne.s32.totalorder %s134, %s135
      %p146 = scmp.eq.s32.totalorder %s23, 0
      %p147 = por %p145, %p146
      %p148 = scmp.ne.s32.totalorder %s134, %s135
      %p149 = scmp.eq.s32.totalorder %s24, 1
      %p150 = por %p148, %p149
      %p152 = scmp.ne.s32.totalorder %s135, %s151
      %p153 = scmp.eq.s32.totalorder %s24, 0
      %p154 = por %p152, %p153
      %p155 = scmp.le.s32.totalorder 1, %s18
      %p156 = scmp.lt.s32.totalorder %s18, 3
      %p157 = pnand %p155, %p156
      %p158 = pneg %p157
      // Predicated region
      $region9: #{tpu_custom_call.1} parent=5 // pred_check
        _
      $region10: #{tpu_custom_call.1} parent=5 // pred_check_branch
        %160 = sbr.rel (%p157) target = $region12
      $region11: #{tpu_custom_call.1} parent=5 // pred_region
        %s161 = ssub.s32 %s18, 1
        // Predicated region
        $region13: #{tpu_custom_call.1} parent=11 // pred_check
          %p162 = pneg %p79
        $region14: #{tpu_custom_call.1} parent=11 // pred_check_branch
          %164 = sbr.rel (%p162) target = $region16
        $region15: #{tpu_custom_call.1} parent=11 // pred_region
          %166 = vsyncadd [#allocation8], 0
          %s167 = sshll.u32 %s1, 4
          %s168 = int_to_ptr.hbm [resolvable:$true] %s167
          %s169 = sshll.u32 [#allocation7], 4
          %s170 = int_to_ptr.vmem [resolvable:$true] %s169
          %175 = dma.hbm_to_vmem [thread:$0]  %s168, 256, %s170, [#allocation8], 64, 64, 4
        $region16: #{tpu_custom_call.1} parent=11 // pred_fallthru
          _
        // Predicated region
        $region17: #{tpu_custom_call.1} parent=11 // pred_check
          %p176 = pneg %p100
        $region18: #{tpu_custom_call.1} parent=11 // pred_check_branch
          %178 = sbr.rel (%p176) target = $region20
        $region19: #{tpu_custom_call.1} parent=11 // pred_region
          %180 = vsyncadd [#allocation8], 0
          %s181 = sshll.u32 %s2, 4
          %s182 = int_to_ptr.hbm [resolvable:$true] %s181
          %s183 = sshll.u32 [#allocation9], 4
          %s184 = int_to_ptr.vmem [resolvable:$true] %s183
          %189 = dma.hbm_to_vmem [thread:$0]  %s182, 256, %s184, [#allocation8], 64, 64, 4
        $region20: #{tpu_custom_call.1} parent=11 // pred_fallthru
          _
        // Predicated region
        $region21: #{tpu_custom_call.1} parent=11 // pred_check
          %p190 = pneg %p121
        $region22: #{tpu_custom_call.1} parent=11 // pred_check_branch
          %192 = sbr.rel (%p190) target = $region24
        $region23: #{tpu_custom_call.1} parent=11 // pred_region
          %194 = vsyncadd [#allocation11], 0
          %s195 = sshll.u32 %s3, 4
          %s196 = int_to_ptr.hbm [resolvable:$true] %s195
          %s197 = sshll.u32 [#allocation10], 4
          %s198 = int_to_ptr.vmem [resolvable:$true] %s197
          %203 = dma.hbm_to_vmem [thread:$0]  %s196, 512, %s198, [#allocation11], 128, 128, 8
        $region24: #{tpu_custom_call.1} parent=11 // pred_fallthru
          _
      $region12: #{tpu_custom_call.1} parent=5 // pred_fallthru
        _
      %p204 = scmp.lt.s32.totalorder %s18, 2
      // Predicated region
      $region25: #{tpu_custom_call.1} parent=5 // pred_check
        %p205 = pneg %p204
      $region26: #{tpu_custom_call.1} parent=5 // pred_check_branch
        %207 = sbr.rel (%p205) target = $region28
      $region27: #{tpu_custom_call.1} parent=5 // pred_region
        // Predicated region
        $region29: #{tpu_custom_call.1} parent=27 // pred_check
          %p208 = pneg %p52
        $region30: #{tpu_custom_call.1} parent=27 // pred_check_branch
          %210 = sbr.rel (%p208) target = $region32
        $region31: #{tpu_custom_call.1} parent=27 // pred_region
          %s211 = sand.u32 %s42, 1
          %s212 = scalar_lea.sflag [#allocation5], %s211
          %s213 = sand.u32 %s42, 1
          %s214 = smul.addr %s213, 8
          %s215 = scalar_lea.vmem [#allocation4], %s214
          %217 = vsyncadd %s212, 0
          %s218 = sadd.s32 %s26, %s25
          %s219 = smul.addr %s218, 8
          %s220 = scalar_lea.hbm %s0, %s219
          %s222 = sshll.u32 %s220, 4
          %s223 = int_to_ptr.hbm [resolvable:$true] %s222
          %s224 = sshll.u32 %s215, 4
          %s225 = int_to_ptr.vmem [resolvable:$true] %s224
          %227 = dma.hbm_to_vmem [thread:$0]  %s223, 128, %s225, %s212
        $region32: #{tpu_custom_call.1} parent=27 // pred_fallthru
          _
      $region28: #{tpu_custom_call.1} parent=5 // pred_fallthru
        _
      %p228 = scmp.le.s32.totalorder 1, %s18
      %p229 = scmp.lt.s32.totalorder %s18, 3
      %p230 = pnand %p228, %p229
      %p231 = pneg %p230
      // Predicated region
      $region33: #{tpu_custom_call.1} parent=5 // pred_check
        _
      $region34: #{tpu_custom_call.1} parent=5 // pred_check_branch
        %233 = sbr.rel (%p230) target = $region36
      $region35: #{tpu_custom_call.1} parent=5 // pred_region
        %s234 = ssub.s32 %s18, 1
        %s235 = sand.u32 %s45, 1
        %s236 = scalar_lea.sflag [#allocation5], %s235
        %s237 = sand.u32 %s45, 1
        %s238 = smul.addr %s237, 8
        %s239 = scalar_lea.vmem [#allocation4], %s238
        // Predicated region
        $region37: #{tpu_custom_call.1} parent=35 // pred_check
          %p240 = pneg %p58
        $region38: #{tpu_custom_call.1} parent=35 // pred_check_branch
          %242 = sbr.rel (%p240) target = $region40
        $region39: #{tpu_custom_call.1} parent=35 // pred_region
          %244 = dma.done %s236, 128
        $region40: #{tpu_custom_call.1} parent=35 // pred_fallthru
          _
        // Predicated region
        $region41: #{tpu_custom_call.1} parent=35 // pred_check
          %p245 = pneg %p79
        $region42: #{tpu_custom_call.1} parent=35 // pred_check_branch
          %247 = sbr.rel (%p245) target = $region44
        $region43: #{tpu_custom_call.1} parent=35 // pred_region
          %249 = dma.done [#allocation8], 256
        $region44: #{tpu_custom_call.1} parent=35 // pred_fallthru
          _
        // Predicated region
        $region45: #{tpu_custom_call.1} parent=35 // pred_check
          %p250 = pneg %p100
        $region46: #{tpu_custom_call.1} parent=35 // pred_check_branch
          %252 = sbr.rel (%p250) target = $region48
        $region47: #{tpu_custom_call.1} parent=35 // pred_region
          %254 = dma.done [#allocation8], 256
        $region48: #{tpu_custom_call.1} parent=35 // pred_fallthru
          _
        // Predicated region
        $region49: #{tpu_custom_call.1} parent=35 // pred_check
          %p255 = pneg %p121
        $region50: #{tpu_custom_call.1} parent=35 // pred_check_branch
          %257 = sbr.rel (%p255) target = $region52
        $region51: #{tpu_custom_call.1} parent=35 // pred_region
          %259 = dma.done [#allocation11], 512
        $region52: #{tpu_custom_call.1} parent=35 // pred_fallthru
          _
        %s260 = sand.u32 %s45, 1
        %s261 = scalar_lea.sflag [#allocation5], %s260
        %s262 = sand.u32 %s45, 1
        %s263 = smul.addr %s262, 8
        %s264 = scalar_lea.vmem [#allocation4], %s263
        %p265 = pneg %p58
        %p266 = pneg %p55
        %p267 = pneg %p79
        %p268 = pneg %p76
        %p269 = pneg %p100
        %p270 = pneg %p97
        %p271 = pneg %p121
        %p272 = pneg %p118
        %p273 = pneg %p147
        %p274 = pneg %p144
        %s275 = sand.u32 %s134, 1
        %s276 = scalar_lea.sflag [#allocation6], %s275
        %s277 = sand.u32 %s134, 1
        %s278 = smul.addr %s277, 16
        %s279 = scalar_lea.vmem [#allocation12], %s278
        %p281 = scmp.eq.s32.totalorder %s28, 0
        // Predicated region
        $region53: #{tpu_custom_call.1} parent=35 // pred_check
          %p282 = pneg %p281
        $region54: #{tpu_custom_call.1} parent=35 // pred_check_branch
          %284 = sbr.rel (%p282) target = $region56
        $region55: #{tpu_custom_call.1} parent=35 // pred_region
          %vm285 = vcmask 261120
          %286 = vst.msk [vmem:[#allocation2] sm:$0xff] %vm285, 0.0
          %287 = vst.msk [vmem:[#allocation2 + $0x8] sm:$0xff] %vm285, 0.0
          %288 = vst.msk [vmem:[#allocation2 + $0x10] sm:$0xff] %vm285, 0.0
          %289 = vst.msk [vmem:[#allocation2 + $0x18] sm:$0xff] %vm285, 0.0
          %vm290 = vcmask 253952
          %291 = vst.msk [vmem:[#allocation3] sm:$0x1] %vm290, 0.0
        $region56: #{tpu_custom_call.1} parent=35 // pred_fallthru
          _
        %v292 = vld [vmem:[%s239] sm:$0xff]
        %v293 = vpack.c.bf16 %v292, %v292
        %v294 = vld [vmem:[#allocation7] sm:$0xf]
        %v295 = vld [vmem:[#allocation7 + $0x4] sm:$0xf]
        %v296 = vld [vmem:[#allocation7 + $0x8] sm:$0xf]
        %v297 = vld [vmem:[#allocation7 + $0xc] sm:$0xf]
        %v302 = vunpack.c.l.b16 %v294
        %v303 = vunpack.c.l.b16 %v295
        %v304 = vunpack.c.l.b16 %v296
        %v305 = vunpack.c.l.b16 %v297
        %v306 = vpack.c.b16 %v303, %v302
        %v307 = vpack.c.b16 %v305, %v304
        %vm310 = vcmask 261120
        %v312 = vsel %vm310, %v293, 0
        %314 = vmatpush.bf16.msra.mxu0 0
        %315 = vmatpush.bf16.msra.mxu0 0
        %316 = vmatpush.bf16.msra.mxu0 0
        %317 = vmatpush.bf16.msra.mxu0 0
        %318 = vmatpush.bf16.msra.mxu0 0
        %319 = vmatpush.bf16.msra.mxu0 0
        %320 = vmatpush.bf16.msra.mxu0 %v307
        %321 = vmatpush.bf16.msra.mxu0 %v306
        %322 = vmatmul.bf16.gmra.mxu0 %v312
        %v323 = vpop.f32.mrf.mxu0
        %v324 = vadd.f32 0.0, %v323
        %v325 = vpop.f32.mrf.mxu0
        %326 = vdwg.mxu0
        %v327 = vld [vmem:[#allocation9] sm:$0xf]
        %v328 = vld [vmem:[#allocation9 + $0x4] sm:$0xf]
        %v329 = vld [vmem:[#allocation9 + $0x8] sm:$0xf]
        %v330 = vld [vmem:[#allocation9 + $0xc] sm:$0xf]
        %v335 = vunpack.c.l.b16 %v327
        %v336 = vunpack.c.l.b16 %v328
        %v337 = vunpack.c.l.b16 %v329
        %v338 = vunpack.c.l.b16 %v330
        %v339 = vpack.c.b16 %v336, %v335
        %v340 = vpack.c.b16 %v338, %v337
        %343 = vmatpush.bf16.msra.mxu0 0
        %344 = vmatpush.bf16.msra.mxu0 0
        %345 = vmatpush.bf16.msra.mxu0 0
        %346 = vmatpush.bf16.msra.mxu0 0
        %347 = vmatpush.bf16.msra.mxu0 0
        %348 = vmatpush.bf16.msra.mxu0 0
        %349 = vmatpush.bf16.msra.mxu0 %v340
        %350 = vmatpush.bf16.msra.mxu0 %v339
        %351 = vmatmul.bf16.gmra.mxu0 %v312
        %v352 = vpop.f32.mrf.mxu0
        %v353 = vadd.f32 0.0, %v352
        %v354 = vpop.f32.mrf.mxu0
        %355 = vdwg.mxu0
        %vm356 = vcmp.gt.f32.partialorder %v324, 0.0
        %v357 = vadd.f32 %v324, 1.0
        %v358 = vmul.f32 %v324, 1.442695
        %v359 = vpow.pop %v358
        %v360 = vsel %vm356, %v357, %v359
        %v361 = vld [vmem:[#allocation2] sm:$0xff]
        %v362 = vld [vmem:[#allocation2 + $0x8] sm:$0xff]
        %v363 = vld [vmem:[#allocation2 + $0x10] sm:$0xff]
        %v364 = vld [vmem:[#allocation2 + $0x18] sm:$0xff]
        %v365 = vpack.c.bf16 %v360, %v360
        %v366 = vpack.c.bf16 %v353, %v353
        %367 = vxpose.xlu0.c.b16.start [1/8] %v365, 128
        %368 = vxpose.xlu0.c.b16.cont [2/8] 0, 128
        %369 = vxpose.xlu0.c.b16.cont [3/8] 0, 128
        %370 = vxpose.xlu0.c.b16.cont [4/8] 0, 128
        %371 = vxpose.xlu0.c.b16.cont [5/8] 0, 128
        %372 = vxpose.xlu0.c.b16.cont [6/8] 0, 128
        %373 = vxpose.xlu0.c.b16.cont [7/8] 0, 128
        %374 = vxpose.xlu0.c.b16.end [8/8] 0, 128
        %v375 = vpop.trf.xlu0
        %v376 = vpop.trf.xlu0
        %v377 = vpop.trf.xlu0
        %v378 = vpop.trf.xlu0
        %v379 = vpop.trf.xlu0
        %v380 = vpop.trf.xlu0
        %v381 = vpop.trf.xlu0
        %v382 = vpop.trf.xlu0
        %vm383 = vcmask 64512
        %v385 = vsel %vm383, %v375, 0
        %v388 = vsel %vm383, %v376, 0
        %vm390 = vcmask 1043456
        %v392 = vsel %vm390, %v366, 0
        %394 = vmatpush.bf16.msra.mxu0 0
        %395 = vmatpush.bf16.msra.mxu0 0
        %396 = vmatpush.bf16.msra.mxu0 0
        %397 = vmatpush.bf16.msra.mxu0 0
        %398 = vmatpush.bf16.msra.mxu0 0
        %399 = vmatpush.bf16.msra.mxu0 0
        %400 = vmatpush.bf16.msra.mxu0 0
        %401 = vmatpush.bf16.msra.mxu0 %v392
        %402 = vmatmul.bf16.gmra.mxu0 %v385
        %v403 = vpop.f32.mrf.mxu0
        %v404 = vadd.f32 0.0, %v403
        %v405 = vpop.f32.mrf.mxu0
        %v406 = vadd.f32 0.0, %v405
        %407 = vmatmul.bf16.gmra.mxu0 %v388
        %v408 = vpop.f32.mrf.mxu0
        %v409 = vadd.f32 0.0, %v408
        %v410 = vpop.f32.mrf.mxu0
        %v411 = vadd.f32 0.0, %v410
        %412 = vdwg.mxu0
        %v413 = vadd.f32 %v361, %v404
        %v414 = vadd.f32 %v362, %v406
        %v415 = vadd.f32 %v363, %v409
        %v416 = vadd.f32 %v364, %v411
        %417 = vst.msk [vmem:[#allocation2] sm:$0xff] %vm310, %v413
        %418 = vst.msk [vmem:[#allocation2 + $0x8] sm:$0xff] %vm310, %v414
        %419 = vst.msk [vmem:[#allocation2 + $0x10] sm:$0xff] %vm310, %v415
        %420 = vst.msk [vmem:[#allocation2 + $0x18] sm:$0xff] %vm310, %v416
        %v421 = vld [vmem:[#allocation3] sm:$0x1]
        %v422 = vsel %vm310, %v360, 0.0
        %v423 = vrot.slane %v422, 4
        %v424 = vadd.f32 %v422, %v423
        %v425 = vrot.slane %v424, 2
        %v426 = vadd.f32 %v424, %v425
        %v427 = vrot.slane %v426, 1
        %v428 = vadd.f32 %v426, %v427
        %v429 = vadd.f32 %v421, %v428
        %vm430 = vcmask 253952
        %431 = vst.msk [vmem:[#allocation3] sm:$0x1] %vm430, %v429
        // Predicated region
        $region57: #{tpu_custom_call.1} parent=35 // pred_check
          %p432 = pneg %p281
        $region58: #{tpu_custom_call.1} parent=35 // pred_check_branch
          %434 = sbr.rel (%p432) target = $region60
        $region59: #{tpu_custom_call.1} parent=35 // pred_region
          %v435 = vld [vmem:[#allocation10] sm:$0xff]
          %v436 = vld [vmem:[#allocation10 + $0x8] sm:$0xff]
          %v437 = vld [vmem:[#allocation10 + $0x10] sm:$0xff]
          %v438 = vld [vmem:[#allocation10 + $0x18] sm:$0xff]
          %v439 = vld [vmem:[#allocation2] sm:$0xff]
          %v440 = vld [vmem:[#allocation2 + $0x8] sm:$0xff]
          %v441 = vld [vmem:[#allocation2 + $0x10] sm:$0xff]
          %v442 = vld [vmem:[#allocation2 + $0x18] sm:$0xff]
          %v443 = vmul.f32 %v439, %v435
          %v444 = vmul.f32 %v440, %v436
          %v445 = vmul.f32 %v441, %v437
          %v446 = vmul.f32 %v442, %v438
          %v447 = vmul.f32 %v443, 0.125
          %v448 = vmul.f32 %v444, 0.125
          %v449 = vmul.f32 %v445, 0.125
          %v450 = vmul.f32 %v446, 0.125
          %v451 = vld [vmem:[#allocation3] sm:$0x1]
          %v453 = vperm.slane %v451, 0
          %v455 = vmul.f32 %v435, %v453
          %v456 = vmul.f32 %v436, %v453
          %v457 = vmul.f32 %v437, %v453
          %v458 = vmul.f32 %v438, %v453
          %459 = vxpose.xlu0.b32.start [1/16] %v455, 128
          %460 = vxpose.xlu0.b32.cont [2/16] %v456, 128
          %461 = vxpose.xlu0.b32.cont [3/16] %v457, 128
          %462 = vxpose.xlu0.b32.cont [4/16] %v458, 128
          %463 = vxpose.xlu0.b32.cont [5/16] 0.0, 128
          %464 = vxpose.xlu0.b32.cont [6/16] 0.0, 128
          %465 = vxpose.xlu0.b32.cont [7/16] 0.0, 128
          %466 = vxpose.xlu0.b32.cont [8/16] 0.0, 128
          %467 = vxpose.xlu0.b32.cont [9/16] 0.0, 128
          %468 = vxpose.xlu0.b32.cont [10/16] 0.0, 128
          %469 = vxpose.xlu0.b32.cont [11/16] 0.0, 128
          %470 = vxpose.xlu0.b32.cont [12/16] 0.0, 128
          %471 = vxpose.xlu0.b32.cont [13/16] 0.0, 128
          %472 = vxpose.xlu0.b32.cont [14/16] 0.0, 128
          %473 = vxpose.xlu0.b32.cont [15/16] 0.0, 128
          %474 = vxpose.xlu0.b32.end [16/16] 0.0, 128
          %v475 = vpop.trf.xlu0
          %v476 = vpop.trf.xlu0
          %v477 = vpop.trf.xlu0
          %v478 = vpop.trf.xlu0
          %v479 = vpop.trf.xlu0
          %v480 = vpop.trf.xlu0
          %v481 = vpop.trf.xlu0
          %v482 = vpop.trf.xlu0
          %v483 = vpop.trf.xlu0
          %v484 = vpop.trf.xlu0
          %v485 = vpop.trf.xlu0
          %v486 = vpop.trf.xlu0
          %v487 = vpop.trf.xlu0
          %v488 = vpop.trf.xlu0
          %v489 = vpop.trf.xlu0
          %v490 = vpop.trf.xlu0
          %v491 = vmul.f32 %v475, 0.125
          %v492 = vmul.f32 %v476, 0.125
          %v493 = vmul.f32 %v477, 0.125
          %v494 = vmul.f32 %v478, 0.125
          %499 = vrot.lane.b32.xlu0 %v491, 32
          %v500 = vpop.permute.xlu0 %499
          %501 = vrot.lane.b32.xlu0 %v492, 32
          %v502 = vpop.permute.xlu0 %501
          %503 = vrot.lane.b32.xlu0 %v493, 32
          %v504 = vpop.permute.xlu0 %503
          %505 = vrot.lane.b32.xlu0 %v494, 32
          %v506 = vpop.permute.xlu0 %505
          %v511 = vsel %vm310, %v447, %v500
          %v512 = vsel %vm310, %v448, %v502
          %v513 = vsel %vm310, %v449, %v504
          %v514 = vsel %vm310, %v450, %v506
          %v515 = vpack.c.bf16 %v511, %v511
          %v516 = vpack.c.bf16 %v512, %v512
          %v517 = vpack.c.bf16 %v513, %v513
          %v518 = vpack.c.bf16 %v514, %v514
          %vm519 = vcmask 519168
          %520 = vst.msk [vmem:[%s279] sm:$0xf] %vm519, %v515
          %521 = vst.msk [vmem:[%s279 + $0x4] sm:$0xf] %vm519, %v516
          %522 = vst.msk [vmem:[%s279 + $0x8] sm:$0xf] %vm519, %v517
          %523 = vst.msk [vmem:[%s279 + $0xc] sm:$0xf] %vm519, %v518
        $region60: #{tpu_custom_call.1} parent=35 // pred_fallthru
          _
        %s524 = sand.u32 %s134, 1
        %s525 = scalar_lea.sflag [#allocation6], %s524
        %s526 = sand.u32 %s134, 1
        %s527 = smul.addr %s526, 16
        %s528 = scalar_lea.vmem [#allocation12], %s527
        // Predicated region
        $region61: #{tpu_custom_call.1} parent=35 // pred_check
          %p529 = pneg %p144
        $region62: #{tpu_custom_call.1} parent=35 // pred_check_branch
          %531 = sbr.rel (%p529) target = $region64
        $region63: #{tpu_custom_call.1} parent=35 // pred_region
          %533 = vsyncadd %s525, 0
          %s534 = smul.addr %s27, 4
          %s535 = smul.addr %s534, 4
          %s536 = scalar_lea.hbm %s4, %s535
          %s537 = sshll.u32 %s528, 4
          %s538 = int_to_ptr.vmem [resolvable:$true] %s537
          %s539 = sshll.u32 %s536, 4
          %s540 = int_to_ptr.hbm [resolvable:$true] %s539
          %545 = dma.vmem_to_hbm [thread:$0]  %s538, 256, %s540, %s525, 64, 64, 4
        $region64: #{tpu_custom_call.1} parent=35 // pred_fallthru
          _
      $region36: #{tpu_custom_call.1} parent=5 // pred_fallthru
        _
      %p546 = scmp.le.s32.totalorder 2, %s18
      // Predicated region
      $region65: #{tpu_custom_call.1} parent=5 // pred_check
        %p547 = pneg %p546
      $region66: #{tpu_custom_call.1} parent=5 // pred_check_branch
        %549 = sbr.rel (%p547) target = $region68
      $region67: #{tpu_custom_call.1} parent=5 // pred_region
        %s550 = ssub.s32 %s18, 2
        // Predicated region
        $region69: #{tpu_custom_call.1} parent=67 // pred_check
          %p551 = pneg %p150
        $region70: #{tpu_custom_call.1} parent=67 // pred_check_branch
          %553 = sbr.rel (%p551) target = $region72
        $region71: #{tpu_custom_call.1} parent=67 // pred_region
          %s554 = sand.u32 %s135, 1
          %s555 = scalar_lea.sflag [#allocation6], %s554
          %s556 = sand.u32 %s135, 1
          %s557 = smul.addr %s556, 16
          %s558 = scalar_lea.vmem [#allocation12], %s557
          %560 = dma.done %s555, 256
        $region72: #{tpu_custom_call.1} parent=67 // pred_fallthru
          _
      $region68: #{tpu_custom_call.1} parent=5 // pred_fallthru
        _
    $region6: #{tpu_custom_call.1} parent=1 // loop_footer
      %s22 = sadd.s32 1, %s18
    $region7: #{tpu_custom_call.1} parent=1 // loop_footer_branch
      %17 = sbr.rel target = $region3
    $region8: #{tpu_custom_call.1} parent=1 // loop_exit
      _
    %561 = vsyncpa [#allocation5], 1
    %s562 = scalar_lea.sflag [#allocation5], 1
    %563 = vsyncpa %s562, 1
    %564 = vsyncpa [#allocation8], 1
    %565 = vsyncpa [#allocation11], 1
    %566 = vsyncpa [#allocation6], 1
    %s567 = scalar_lea.sflag [#allocation6], 1
    %568 = vsyncpa %s567, 1

</llo_original>
